<compile_context>
chip_gen: v7x
topology: tpu7x:2x2x1
jax: 0.10.0
libtpu: 0.0.40
codegen_flags: <defaults>
</compile_context>

<pallas_src>
import functools
import math

import jax
import jax.numpy as jnp
from jax.experimental import pallas as pl
from jax.experimental.pallas import tpu as pltpu


# --------------------------------- kernel ----------------------------------

def rgl_kernel(x_ref, w1_ref, w23_ref, rid_ref, cid_ref, out_ref,
               *, num_layer, matmul_dtype):
    m = out_ref.shape[0]          # TB * N rows in this batch block
    d_in = x_ref.shape[1]         # padded merged feature dim (16)
    h_dim = w1_ref.shape[1]       # 128 (two 64-wide hidden branches)
    x_dim = out_ref.shape[1]      # 32

    # ---- merged embedding MLPs: block-diagonal W1, stacked W2 ----
    x = x_ref[...]                                        # (M, 16)
    w1 = w1_ref[0:d_in, :]                                # (16, 128)
    b1 = w1_ref[d_in:d_in + 1, :]                         # (1, 128)  [b1g | b1a]
    h = jnp.maximum(jnp.dot(x, w1, preferred_element_type=jnp.float32) + b1, 0.0)

    w2 = w23_ref[0:h_dim, :]                              # (128, 32) [W2g; W2a]
    b2_base = h_dim + (num_layer + 1) * x_dim
    b2 = w23_ref[b2_base:b2_base + m, :]                  # (M, 32) per-row eff. bias
    # effective biases (precomputed in pack_weights) cancel the cross-branch
    # relu(b1_other) @ W2_other terms exactly, so this equals the two branch MLPs
    H = jnp.maximum(jnp.dot(h, w2, preferred_element_type=jnp.float32) + b2, 0.0)

    # ---- block-diagonal mask from precomputed row/col batch ids (no int div) ----
    same = rid_ref[...] == cid_ref[...]                   # (M,1)==(1,M) -> (M,M)
    neg_big = jnp.float32(-1e30)

    wa = w23_ref[h_dim:h_dim + x_dim, :]                  # (32, 32)
    for layer in range(num_layer):
        off = h_dim + (layer + 1) * x_dim
        ws = w23_ref[off:off + x_dim, :]                  # (32, 32) Ws[layer]
        Hm = H.astype(matmul_dtype)
        # logits = (H @ w_a) @ H^T restricted to each batch element's block
        s = jnp.dot(H, wa, preferred_element_type=jnp.float32)        # (M, 32)
        logits = jax.lax.dot_general(
            s.astype(matmul_dtype), Hm, (((1,), (1,)), ((), ())),
            preferred_element_type=jnp.float32)                       # (M, M)
        logits = jnp.where(same, logits, neg_big)      # mask BEFORE the row max
        logits = logits - jnp.max(logits, axis=-1, keepdims=True)
        e = jnp.exp(logits)                            # off-block -> exactly 0
        denom = jnp.sum(e, axis=-1, keepdims=True)     # (M, 1)
        # fused softmax normalization: aggregate with unnormalized weights, then
        # rescale the (M,32) result with an exact divide (no approx reciprocal).
        agg = jnp.dot(e.astype(matmul_dtype), Hm,
                      preferred_element_type=jnp.float32) * (1.0 / denom)
        H = jnp.maximum(jnp.dot(agg, ws, preferred_element_type=jnp.float32), 0.0)

    # TODO(synk): output is 32 lanes wide (masked vst path); a lane-dense
    # (TB, N*32) store needs an in-kernel sublane->lane relayout -- skipped.
    out_ref[...] = H.astype(out_ref.dtype)


# --------------------------------- helpers ----------------------------------

def _round_up(x, mult):
    return ((x + mult - 1) // mult) * mult


def _choose_tb(batch, n_agents, target_rows=128):
    """Batch-block size: ~128 rows per block, TB*N % 8 == 0, split only if big."""
    unit = 8 // math.gcd(n_agents, 8)          # TB granularity so TB*N % 8 == 0
    # TODO(synk): for odd N this forces TB to multiples of 8; in-block N padding
    # would avoid the padded-batch compute for tiny B.
    target = max(unit, (max(1, target_rows // n_agents) // unit) * unit)
    tb = max(unit, min(target, _round_up(batch, unit)))
    # v7x has 2 TensorCores: only split into >=2 parallel grid steps when each
    # half still carries >= target_rows of real work.
    if pl.cdiv(batch, tb) < 2:
        half = ((batch // 2) // unit) * unit
        if half > 0 and half * n_agents >= target_rows:
            tb = half
    return tb


def pack_weights(params, n_group, n_agents):
    w1g, b1g = params["w1g"], params["b1g"]    # (8,64), (1,64)
    w2g, b2g = params["w2g"], params["b2g"]    # (64,32), (1,32)
    w1a, b1a = params["w1a"], params["b1a"]    # (5,64), (1,64)
    w2a, b2a = params["w2a"], params["b2a"]    # (64,32), (1,32)
    d_g, h_g = w1g.shape
    d_a, h_a = w1a.shape
    h_dim = h_g + h_a                          # 128
    d_in = _round_up(d_g + d_a, 8)             # 16 (padded merged feature dim)

    # slab A (128 lanes): block-diagonal W1 on rows [0, d_in), concat bias row.
    w1_rows = _round_up(d_in + 1, 8)
    w1_pack = jnp.zeros((w1_rows, h_dim), jnp.float32)
    w1_pack = w1_pack.at[:d_g, :h_g].set(w1g)
    w1_pack = w1_pack.at[d_g:d_g + d_a, h_g:].set(w1a)
    w1_pack = w1_pack.at[d_in, :h_g].set(b1g[0])
    w1_pack = w1_pack.at[d_in, h_g:].set(b1a[0])

    # stacked W2 + per-slot *effective* output bias.  Subtracting
    # relu(b1_other) @ W2_other makes the single merged matmul exactly equal to
    # the two separate branch MLPs.
    w2_stack = jnp.concatenate([w2g, w2a], axis=0)                 # (128, 32)
    b2g_eff = b2g - jnp.maximum(b1a, 0.0) @ w2a                    # (1, 32)
    b2a_eff = b2a - jnp.maximum(b1g, 0.0) @ w2g                    # (1, 32)
    slot_is_group = (jnp.arange(n_agents) < n_group)[:, None]      # (N, 1)
    b2_tbl = jnp.where(slot_is_group, b2g_eff, b2a_eff)            # (N, 32)

    w3_stack = jnp.concatenate([params["wa"], params["ws0"], params["ws1"]],
                               axis=0)                             # (96, 32)
    return w1_pack, w2_stack, b2_tbl, w3_stack, d_in


# --------------------------------- wrapper ----------------------------------

def rgl_forward(group_state, agents_state, params, *, matmul_dtype=jnp.float32):
    B, n_g, d_g = group_state.shape
    _, n_a, d_a = agents_state.shape
    N = n_g + n_a
    num_layer = 2

    w1_pack, w2_stack, b2_tbl, w3_stack, d_in = pack_weights(params, n_g, N)
    h_dim = w1_pack.shape[1]                   # 128
    x_dim = w2_stack.shape[1]                  # 32

    tb = _choose_tb(B, N)
    b_pad = _round_up(B, tb)
    m = tb * N
    n_blocks = b_pad // tb

    # merged, zero-padded input stream: (B_pad * N, d_in)
    # TODO(synk): could be moved inside the kernel (two small matmuls) to save
    # one HBM round trip of x for large B.
    x = jnp.zeros((b_pad, N, d_in), jnp.float32)
    x = x.at[:B, :n_g, :d_g].set(group_state.astype(jnp.float32))
    x = x.at[:B, n_g:, d_g:d_g + d_a].set(agents_state.astype(jnp.float32))
    x = x.reshape(b_pad * N, d_in)

    # single 32-lane-wide slab: [W2 stacked | w_a | Ws0 | Ws1 | per-row eff bias]
    b2_rows = jnp.tile(b2_tbl, (tb, 1))                            # (m, 32)
    w23_pack = jnp.concatenate([w2_stack, w3_stack, b2_rows], axis=0)

    # block-id vectors for the block-diagonal mask (block-invariant, tiny)
    rid = (jnp.arange(m, dtype=jnp.int32) // N).reshape(m, 1)      # (m, 1)
    cid = rid.reshape(1, m)                                        # (1, m)

    kernel = functools.partial(rgl_kernel, num_layer=num_layer,
                               matmul_dtype=matmul_dtype)

    per_layer = 4 * m * x_dim * x_dim + 4 * m * m * x_dim
    flops_blk = 2 * m * d_in * h_dim + 2 * m * h_dim * x_dim + num_layer * per_layer
    cost = pl.CostEstimate(
        flops=n_blocks * flops_blk,
        transcendentals=n_blocks * num_layer * m * m,
        bytes_accessed=4 * (x.size + b_pad * N * x_dim
                            + w1_pack.size + w23_pack.size + 2 * m))

    out = pl.pallas_call(
        kernel,
        out_shape=jax.ShapeDtypeStruct((b_pad * N, x_dim), jnp.float32),
        grid=(n_blocks,),
        in_specs=[
            pl.BlockSpec((m, d_in), lambda i: (i, 0)),
            pl.BlockSpec(w1_pack.shape, lambda i: (0, 0)),
            pl.BlockSpec(w23_pack.shape, lambda i: (0, 0)),
            pl.BlockSpec((m, 1), lambda i: (0, 0)),
            pl.BlockSpec((1, m), lambda i: (0, 0)),
        ],
        out_specs=pl.BlockSpec((m, x_dim), lambda i: (i, 0)),
        compiler_params=pltpu.CompilerParams(
            dimension_semantics=("parallel",)),
        cost_estimate=cost,
    )(x, w1_pack, w23_pack, rid, cid)

    return out.reshape(b_pad, N, x_dim)[:B]


# ----------------------------- parameter init -------------------------------

def _linear_init(key, fan_in, fan_out):
    k_w, k_b = jax.random.split(key)
    bound = 1.0 / (fan_in ** 0.5)
    w = jax.random.uniform(k_w, (fan_in, fan_out), jnp.float32, -bound, bound)
    b = jax.random.uniform(k_b, (1, fan_out), jnp.float32, -bound, bound)
    return w, b


def init_params(key):
    ks = jax.random.split(key, 7)
    w1g, b1g = _linear_init(ks[0], 8, 64)
    w2g, b2g = _linear_init(ks[1], 64, 32)
    w1a, b1a = _linear_init(ks[2], 5, 64)
    w2a, b2a = _linear_init(ks[3], 64, 32)
    # Graph weights at 1/sqrt(X_dim) scale so softmax logits stay O(1): the test
    # then checks structure instead of exponentially amplified matmul rounding.
    scale = 1.0 / (32 ** 0.5)
    wa = jax.random.normal(ks[4], (32, 32), jnp.float32) * scale
    ws0 = jax.random.normal(ks[5], (32, 32), jnp.float32) * scale
    ws1 = jax.random.normal(ks[6], (32, 32), jnp.float32) * scale
    return dict(w1g=w1g, b1g=b1g, w2g=w2g, b2g=b2g,
                w1a=w1a, b1a=b1a, w2a=w2a, b2a=b2a,
                wa=wa, ws0=ws0, ws1=ws1)


# ---------------------------- pure-JAX reference ----------------------------

def rgl_reference(group_state, agents_state, p):
    def mlp2(x, w1, b1, w2, b2):
        h = jnp.maximum(x @ w1 + b1, 0.0)
        return jnp.maximum(h @ w2 + b2, 0.0)

    g_emb = mlp2(group_state, p["w1g"], p["b1g"], p["w2g"], p["b2g"])
    a_emb = mlp2(agents_state, p["w1a"], p["b1a"], p["w2a"], p["b2a"])
    H = jnp.concatenate([g_emb, a_emb], axis=1)
    for ws in (p["ws0"], p["ws1"]):
        logits = jnp.einsum("bnd,de,bme->bnm", H, p["wa"], H)
        A = jax.nn.softmax(logits, axis=-1)
        H = jnp.maximum(jnp.einsum("bnm,bmd,de->bne", A, H, ws), 0.0)
    return H


if __name__ == "__main__":
    key = jax.random.PRNGKey(0)
    k_p, k_g, k_a = jax.random.split(key, 3)

    B, N_G, N_A = 2, 2, 6            # batch, group agents, human agents
    params = init_params(k_p)
    group_state = jax.random.normal(k_g, (B, N_G, 8), jnp.float32)
    agents_state = jax.random.normal(k_a, (B, N_A, 5), jnp.float32)

    out = jax.block_until_ready(rgl_forward(group_state, agents_state, params))

    ref = rgl_reference(group_state, agents_state, params)
    assert out.shape == ref.shape
    if not bool(jnp.allclose(out, ref, atol=2e-2, rtol=2e-2)):
        max_err = float(jnp.max(jnp.abs(out - ref)))
        raise AssertionError(
            f"Pallas RGL output does not match JAX reference (max abs err {max_err})")

    print("KERNEL_OK")
</pallas_src>

<mosaic_0001>
module attributes {stable_mosaic.version = 11 : i64} {
  func.func @rgl_kernel(%arg0: i32, %arg1: memref<16x16xf32, #tpu.memory_space<vmem>>, %arg2: memref<24x128xf32, #tpu.memory_space<vmem>>, %arg3: memref<240x32xf32, #tpu.memory_space<vmem>>, %arg4: memref<16x1xi32, #tpu.memory_space<vmem>>, %arg5: memref<1x16xi32, #tpu.memory_space<vmem>>, %arg6: memref<16x32xf32, #tpu.memory_space<vmem>>) attributes {dimension_semantics = [#tpu.dimension_semantics<parallel>], iteration_bounds = array<i64: 1>, scalar_prefetch = 0 : i64, scratch_operands = 0 : i64, tpu.core_type = #tpu.core_type<tc>, window_params = [{transform_indices = @transform_0, window_bounds = array<i64: 16, 16>}, {pipeline_mode = #tpu.pipeline_mode<synchronous>, transform_indices = @transform_1, window_bounds = array<i64: 24, 128>}, {pipeline_mode = #tpu.pipeline_mode<synchronous>, transform_indices = @transform_2, window_bounds = array<i64: 240, 32>}, {pipeline_mode = #tpu.pipeline_mode<synchronous>, transform_indices = @transform_3, window_bounds = array<i64: 16, 1>}, {pipeline_mode = #tpu.pipeline_mode<synchronous>, transform_indices = @transform_4, window_bounds = array<i64: 1, 16>}, {transform_indices = @transform_5, window_bounds = array<i64: 16, 32>}]} {
    %c0 = arith.constant 0 : index
    %c0_0 = arith.constant 0 : index
    %0 = vector.load %arg1[%c0, %c0_0] : memref<16x16xf32, #tpu.memory_space<vmem>>, vector<16x16xf32>
    %c0_1 = arith.constant 0 : index
    %c0_2 = arith.constant 0 : index
    %1 = vector.load %arg2[%c0_1, %c0_2] : memref<24x128xf32, #tpu.memory_space<vmem>>, vector<16x128xf32>
    %c16 = arith.constant 16 : index
    %c0_3 = arith.constant 0 : index
    %2 = vector.load %arg2[%c16, %c0_3] : memref<24x128xf32, #tpu.memory_space<vmem>>, vector<1x128xf32>
    %cst = arith.constant dense<0.000000e+00> : vector<16x128xf32>
    %3 = tpu.matmul %0, %1, %cst {dimension_numbers = #tpu.dot_dimension_numbers<[1], [0], [0], [1], [0, 0, 1, 1], [], []>} : vector<16x16xf32>, vector<16x128xf32>, vector<16x128xf32> -> vector<16x128xf32>
    %4 = vector.broadcast %2 : vector<1x128xf32> to vector<16x128xf32>
    %5 = arith.addf %3, %4 : vector<16x128xf32>
    %cst_4 = arith.constant 0.000000e+00 : f32
    %6 = vector.broadcast %cst_4 : f32 to vector<16x128xf32>
    %7 = arith.maximumf %5, %6 : vector<16x128xf32>
    %c0_5 = arith.constant 0 : index
    %c0_6 = arith.constant 0 : index
    %8 = vector.load %arg3[%c0_5, %c0_6] : memref<240x32xf32, #tpu.memory_space<vmem>>, vector<128x32xf32>
    %c224 = arith.constant 224 : index
    %c0_7 = arith.constant 0 : index
    %9 = vector.load %arg3[%c224, %c0_7] : memref<240x32xf32, #tpu.memory_space<vmem>>, vector<16x32xf32>
    %cst_8 = arith.constant dense<0.000000e+00> : vector<16x32xf32>
    %10 = tpu.matmul %7, %8, %cst_8 {dimension_numbers = #tpu.dot_dimension_numbers<[1], [0], [0], [1], [0, 0, 1, 1], [], []>} : vector<16x128xf32>, vector<128x32xf32>, vector<16x32xf32> -> vector<16x32xf32>
    %11 = arith.addf %10, %9 : vector<16x32xf32>
    %cst_9 = arith.constant 0.000000e+00 : f32
    %12 = vector.broadcast %cst_9 : f32 to vector<16x32xf32>
    %13 = arith.maximumf %11, %12 : vector<16x32xf32>
    %c0_10 = arith.constant 0 : index
    %c0_11 = arith.constant 0 : index
    %14 = vector.load %arg4[%c0_10, %c0_11] : memref<16x1xi32, #tpu.memory_space<vmem>>, vector<16x1xi32>
    %c0_12 = arith.constant 0 : index
    %c0_13 = arith.constant 0 : index
    %15 = vector.load %arg5[%c0_12, %c0_13] : memref<1x16xi32, #tpu.memory_space<vmem>>, vector<1x16xi32>
    %16 = vector.broadcast %14 : vector<16x1xi32> to vector<16x16xi32>
    %17 = vector.broadcast %15 : vector<1x16xi32> to vector<16x16xi32>
    %18 = arith.cmpi eq, %16, %17 : vector<16x16xi32>
    %c128 = arith.constant 128 : index
    %c0_14 = arith.constant 0 : index
    %19 = vector.load %arg3[%c128, %c0_14] : memref<240x32xf32, #tpu.memory_space<vmem>>, vector<32x32xf32>
    %c160 = arith.constant 160 : index
    %c0_15 = arith.constant 0 : index
    %20 = vector.load %arg3[%c160, %c0_15] : memref<240x32xf32, #tpu.memory_space<vmem>>, vector<32x32xf32>
    %cst_16 = arith.constant dense<0.000000e+00> : vector<16x32xf32>
    %21 = tpu.matmul %13, %19, %cst_16 {dimension_numbers = #tpu.dot_dimension_numbers<[1], [0], [0], [1], [0, 0, 1, 1], [], []>} : vector<16x32xf32>, vector<32x32xf32>, vector<16x32xf32> -> vector<16x32xf32>
    %cst_17 = arith.constant dense<0.000000e+00> : vector<16x16xf32>
    %22 = tpu.matmul %21, %13, %cst_17 {dimension_numbers = #tpu.dot_dimension_numbers<[1], [1], [0], [0], [0, 0, 1, 0], [], []>} : vector<16x32xf32>, vector<16x32xf32>, vector<16x16xf32> -> vector<16x16xf32>
    %cst_18 = arith.constant -1.000000e+30 : f32
    %23 = vector.broadcast %cst_18 : f32 to vector<16x16xf32>
    %24 = arith.select %18, %22, %23 : vector<16x16xi1>, vector<16x16xf32>
    %cst_19 = arith.constant dense<0xFF800000> : vector<16xf32>
    %25 = vector.multi_reduction <maximumf>, %24, %cst_19 [1] : vector<16x16xf32> to vector<16xf32>
    %26 = vector.shape_cast %25 : vector<16xf32> to vector<16x1xf32>
    %27 = vector.broadcast %26 : vector<16x1xf32> to vector<16x16xf32>
    %28 = arith.subf %24, %27 : vector<16x16xf32>
    %29 = math.exp %28 : vector<16x16xf32>
    %cst_20 = arith.constant dense<0.000000e+00> : vector<16xf32>
    %30 = vector.multi_reduction <add>, %29, %cst_20 [1] : vector<16x16xf32> to vector<16xf32>
    %31 = vector.shape_cast %30 : vector<16xf32> to vector<16x1xf32>
    %cst_21 = arith.constant dense<0.000000e+00> : vector<16x32xf32>
    %32 = tpu.matmul %29, %13, %cst_21 {dimension_numbers = #tpu.dot_dimension_numbers<[1], [0], [0], [1], [0, 0, 1, 1], [], []>} : vector<16x16xf32>, vector<16x32xf32>, vector<16x32xf32> -> vector<16x32xf32>
    %cst_22 = arith.constant 1.000000e+00 : f32
    %33 = vector.broadcast %cst_22 : f32 to vector<16x1xf32>
    %34 = arith.divf %33, %31 : vector<16x1xf32>
    %35 = vector.broadcast %34 : vector<16x1xf32> to vector<16x32xf32>
    %36 = arith.mulf %32, %35 : vector<16x32xf32>
    %cst_23 = arith.constant dense<0.000000e+00> : vector<16x32xf32>
    %37 = tpu.matmul %36, %20, %cst_23 {dimension_numbers = #tpu.dot_dimension_numbers<[1], [0], [0], [1], [0, 0, 1, 1], [], []>} : vector<16x32xf32>, vector<32x32xf32>, vector<16x32xf32> -> vector<16x32xf32>
    %cst_24 = arith.constant 0.000000e+00 : f32
    %38 = vector.broadcast %cst_24 : f32 to vector<16x32xf32>
    %39 = arith.maximumf %37, %38 : vector<16x32xf32>
    %c192 = arith.constant 192 : index
    %c0_25 = arith.constant 0 : index
    %40 = vector.load %arg3[%c192, %c0_25] : memref<240x32xf32, #tpu.memory_space<vmem>>, vector<32x32xf32>
    %cst_26 = arith.constant dense<0.000000e+00> : vector<16x32xf32>
    %41 = tpu.matmul %39, %19, %cst_26 {dimension_numbers = #tpu.dot_dimension_numbers<[1], [0], [0], [1], [0, 0, 1, 1], [], []>} : vector<16x32xf32>, vector<32x32xf32>, vector<16x32xf32> -> vector<16x32xf32>
    %cst_27 = arith.constant dense<0.000000e+00> : vector<16x16xf32>
    %42 = tpu.matmul %41, %39, %cst_27 {dimension_numbers = #tpu.dot_dimension_numbers<[1], [1], [0], [0], [0, 0, 1, 0], [], []>} : vector<16x32xf32>, vector<16x32xf32>, vector<16x16xf32> -> vector<16x16xf32>
    %cst_28 = arith.constant -1.000000e+30 : f32
    %43 = vector.broadcast %cst_28 : f32 to vector<16x16xf32>
    %44 = arith.select %18, %42, %43 : vector<16x16xi1>, vector<16x16xf32>
    %cst_29 = arith.constant dense<0xFF800000> : vector<16xf32>
    %45 = vector.multi_reduction <maximumf>, %44, %cst_29 [1] : vector<16x16xf32> to vector<16xf32>
    %46 = vector.shape_cast %45 : vector<16xf32> to vector<16x1xf32>
    %47 = vector.broadcast %46 : vector<16x1xf32> to vector<16x16xf32>
    %48 = arith.subf %44, %47 : vector<16x16xf32>
    %49 = math.exp %48 : vector<16x16xf32>
    %cst_30 = arith.constant dense<0.000000e+00> : vector<16xf32>
    %50 = vector.multi_reduction <add>, %49, %cst_30 [1] : vector<16x16xf32> to vector<16xf32>
    %51 = vector.shape_cast %50 : vector<16xf32> to vector<16x1xf32>
    %cst_31 = arith.constant dense<0.000000e+00> : vector<16x32xf32>
    %52 = tpu.matmul %49, %39, %cst_31 {dimension_numbers = #tpu.dot_dimension_numbers<[1], [0], [0], [1], [0, 0, 1, 1], [], []>} : vector<16x16xf32>, vector<16x32xf32>, vector<16x32xf32> -> vector<16x32xf32>
    %cst_32 = arith.constant 1.000000e+00 : f32
    %53 = vector.broadcast %cst_32 : f32 to vector<16x1xf32>
    %54 = arith.divf %53, %51 : vector<16x1xf32>
    %55 = vector.broadcast %54 : vector<16x1xf32> to vector<16x32xf32>
    %56 = arith.mulf %52, %55 : vector<16x32xf32>
    %cst_33 = arith.constant dense<0.000000e+00> : vector<16x32xf32>
    %57 = tpu.matmul %56, %40, %cst_33 {dimension_numbers = #tpu.dot_dimension_numbers<[1], [0], [0], [1], [0, 0, 1, 1], [], []>} : vector<16x32xf32>, vector<32x32xf32>, vector<16x32xf32> -> vector<16x32xf32>
    %cst_34 = arith.constant 0.000000e+00 : f32
    %58 = vector.broadcast %cst_34 : f32 to vector<16x32xf32>
    %59 = arith.maximumf %57, %58 : vector<16x32xf32>
    %c0_35 = arith.constant 0 : index
    %c0_36 = arith.constant 0 : index
    %60 = vector.load %arg6[%c0_35, %c0_36] : memref<16x32xf32, #tpu.memory_space<vmem>>, vector<16x32xf32>
    tpu.vector_store %arg6[%c0_35, %c0_36], %59 {strides = array<i32>} : memref<16x32xf32, #tpu.memory_space<vmem>>, vector<16x32xf32>,
    return
  }
  func.func @transform_0(%arg0: i32) -> (i32, i32) {
    %c0_i32 = arith.constant 0 : i32
    %c0_i32_0 = arith.constant 0 : i32
    return %arg0, %c0_i32 : i32, i32
  }
  func.func @transform_1(%arg0: i32) -> (i32, i32) {
    %c0_i32 = arith.constant 0 : i32
    %c0_i32_0 = arith.constant 0 : i32
    %c0_i32_1 = arith.constant 0 : i32
    return %c0_i32, %c0_i32_0 : i32, i32
  }
  func.func @transform_2(%arg0: i32) -> (i32, i32) {
    %c0_i32 = arith.constant 0 : i32
    %c0_i32_0 = arith.constant 0 : i32
    %c0_i32_1 = arith.constant 0 : i32
    return %c0_i32, %c0_i32_0 : i32, i32
  }
  func.func @transform_3(%arg0: i32) -> (i32, i32) {
    %c0_i32 = arith.constant 0 : i32
    %c0_i32_0 = arith.constant 0 : i32
    %c0_i32_1 = arith.constant 0 : i32
    return %c0_i32, %c0_i32_0 : i32, i32
  }
  func.func @transform_4(%arg0: i32) -> (i32, i32) {
    %c0_i32 = arith.constant 0 : i32
    %c0_i32_0 = arith.constant 0 : i32
    %c0_i32_1 = arith.constant 0 : i32
    return %c0_i32, %c0_i32_0 : i32, i32
  }
  func.func @transform_5(%arg0: i32) -> (i32, i32) {
    %c0_i32 = arith.constant 0 : i32
    %c0_i32_0 = arith.constant 0 : i32
    return %arg0, %c0_i32 : i32, i32
  }
}

</mosaic_0001>

<llo_original>
// kernel: tpu_custom_call.1
$region0: #{tpu_custom_call.1}
  #allocation0 [shape = 'u32[]', space=smem, size = 0x4, offset = 0x4, fixed_abs, tag = 'smem constant byte address 0x4 - core index']
  #allocation1 [shape = 'u32[144,128]{1,0:T(1,128)}', space=vmem, size = 0x12000, scoped, tag = 'internal scratch']
  %s0 = inlined_call_operand.vmem [shape: f32[16,16], index: 0, kind: input, shape index: {}]
  %s1 = inlined_call_operand.vmem [shape: f32[24,128], index: 1, kind: input, shape index: {}]
  %s2 = inlined_call_operand.vmem [shape: f32[240,32], index: 2, kind: input, shape index: {}]
  %s3 = inlined_call_operand.vmem [shape: s32[16,1], index: 3, kind: input, shape index: {}]
  %s4 = inlined_call_operand.vmem [shape: s32[1,16], index: 4, kind: input, shape index: {}]
  %s5 = inlined_call_operand.hbm [shape: f32[16,32], index: 5, kind: output, shape index: {}]
  %s6 = sld [smem:[#allocation0]]
  $region30: #{tpu_custom_call.1} parent=0
    _
  %s8 = ssub.s32 1, %s6
  %s9 = scalar_select 0, %s8, %s6
  $region1: #{tpu_custom_call.1} parent=0
    #allocation2 [shape = 'u8[8192]{0}', space=vmem, size = 0x2000, scoped, tag = 'output window, operand 0, single buffered']
    #allocation3 [shape = 's32[1]{0}', space=sflag, size = 0x4, scoped, tag = 'scoped memory for tpu_custom_call.1']
    %10 = vsyncpa [#allocation3], 0
    // Predicated region
    $region2: #{tpu_custom_call.1} parent=1 // pred_check
      _
    $region3: #{tpu_custom_call.1} parent=1 // pred_check_branch
      %12 = sbr.rel (0) target = $region5
    $region4: #{tpu_custom_call.1} parent=1 // pred_region
      _
    $region5: #{tpu_custom_call.1} parent=1 // pred_fallthru
      _
    // Predicated region
    $region6: #{tpu_custom_call.1} parent=1 // pred_check
      _
    $region7: #{tpu_custom_call.1} parent=1 // pred_check_branch
      %14 = sbr.rel (0) target = $region9
    $region8: #{tpu_custom_call.1} parent=1 // pred_region
      _
    $region9: #{tpu_custom_call.1} parent=1 // pred_fallthru
      _
    // Predicated region
    $region10: #{tpu_custom_call.1} parent=1 // pred_check
      _
    $region11: #{tpu_custom_call.1} parent=1 // pred_check_branch
      %16 = sbr.rel (0) target = $region13
    $region12: #{tpu_custom_call.1} parent=1 // pred_region
      _
    $region13: #{tpu_custom_call.1} parent=1 // pred_fallthru
      _
    // Predicated region
    $region14: #{tpu_custom_call.1} parent=1 // pred_check
      _
    $region15: #{tpu_custom_call.1} parent=1 // pred_check_branch
      %18 = sbr.rel (0) target = $region17
    $region16: #{tpu_custom_call.1} parent=1 // pred_region
      _
    $region17: #{tpu_custom_call.1} parent=1 // pred_fallthru
      _
    // Predicated region
    $region18: #{tpu_custom_call.1} parent=1 // pred_check
      _
    $region19: #{tpu_custom_call.1} parent=1 // pred_check_branch
      %20 = sbr.rel (0) target = $region21
    $region20: #{tpu_custom_call.1} parent=1 // pred_region
      _
    $region21: #{tpu_custom_call.1} parent=1 // pred_fallthru
      _
    %v21 = vld [vmem:[%s0] sm:$0xff]
    %v22 = vld [vmem:[%s0 + $0x8] sm:$0xff]
    %v23 = vld [vmem:[%s1] sm:$0xff]
    %v24 = vld [vmem:[%s1 + $0x8] sm:$0xff]
    %v25 = vld [vmem:[%s1 + $0x10] sm:$0x1]
    %v26 = vlaneseq
    %v27 = vshrl.u32 %v26, 7
    %v28 = vsub.s32 0, %v27
    %v29 = vrot.slane %v25, %v28
    %vm30 = vcmask 130048
    %v32 = vsel %vm30, %v21, 0
    %v35 = vsel %vm30, %v22, 0
    %37 = vmatprep.subr.mxu0 0.0
    %38 = vmatpush1.msra.mxu0 %v23
    %39 = vmatprep.subr.mxu0 0.0
    %40 = vmatpush1.msra.mxu0 %v24
    %41 = vmatprep.subr.mxu0 0.0
    %42 = vmatpush1.msra.mxu0 0.0
    %43 = vmatprep.subr.mxu0 0.0
    %44 = vmatpush1.msra.mxu0 0.0
    %45 = vmatprep.subr.mxu0 0.0
    %46 = vmatpush1.msra.mxu0 0.0
    %47 = vmatprep.subr.mxu0 0.0
    %48 = vmatpush1.msra.mxu0 0.0
    %49 = vmatprep.subr.mxu0 0.0
    %50 = vmatpush1.msra.mxu0 0.0
    %51 = vmatprep.subr.mxu0 0.0
    %52 = vmatpush1.msra.mxu0 0.0
    %53 = vmatprep.subr.mxu0 0.0
    %54 = vmatpush1.msra.mxu0 0.0
    %55 = vmatprep.subr.mxu0 0.0
    %56 = vmatpush1.msra.mxu0 0.0
    %57 = vmatprep.subr.mxu0 0.0
    %58 = vmatpush1.msra.mxu0 0.0
    %59 = vmatprep.subr.mxu0 0.0
    %60 = vmatpush1.msra.mxu0 0.0
    %61 = vmatprep.subr.mxu0 0.0
    %62 = vmatpush1.msra.mxu0 0.0
    %63 = vmatprep.subr.mxu0 0.0
    %64 = vmatpush1.msra.mxu0 0.0
    %65 = vmatprep.subr.mxu0 0.0
    %66 = vmatpush1.msra.mxu0 0.0
    %67 = vmatprep.subr.mxu0 0.0
    %68 = vmatpush1.msra.mxu0 0.0
    %69 = vmatprep.subr.mxu0 0.0
    %70 = vmatpush1.msra.mxu0 0.0
    %71 = vmatprep.subr.mxu0 0.0
    %72 = vmatpush1.msra.mxu0 0.0
    %73 = vmatprep.subr.mxu0 0.0
    %74 = vmatpush1.msra.mxu0 0.0
    %75 = vmatprep.subr.mxu0 0.0
    %76 = vmatpush1.msra.mxu0 0.0
    %77 = vmatprep.subr.mxu0 0.0
    %78 = vmatpush1.msra.mxu0 0.0
    %79 = vmatprep.subr.mxu0 0.0
    %80 = vmatpush1.msra.mxu0 0.0
    %81 = vmatprep.subr.mxu0 0.0
    %82 = vmatpush1.msra.mxu0 0.0
    %83 = vmatprep.subr.mxu0 0.0
    %84 = vmatpush1.msra.mxu0 0.0
    %85 = vmatprep.subr.mxu0 0.0
    %86 = vmatpush1.msra.mxu0 0.0
    %87 = vmatprep.subr.mxu0 0.0
    %88 = vmatpush1.msra.mxu0 0.0
    %89 = vmatprep.subr.mxu0 0.0
    %90 = vmatpush1.msra.mxu0 0.0
    %91 = vmatprep.subr.mxu0 0.0
    %92 = vmatpush1.msra.mxu0 0.0
    %93 = vmatprep.subr.mxu0 0.0
    %94 = vmatpush1.msra.mxu0 0.0
    %95 = vmatprep.subr.mxu0 0.0
    %96 = vmatpush1.msra.mxu0 0.0
    %97 = vmatprep.subr.mxu0 0.0
    %98 = vmatpush1.msra.mxu0 0.0
    %99 = vmatprep.subr.mxu0 0.0
    %100 = vmatpush1.msra.mxu0 0.0
    %101 = vmatprep.mubr.f32.mxu0 0.0
    %102 = vmatmul.mubr.f32.gmra.mrb[0].mxu0 %v32
    %v103 = vpop.f32.mrb[0].mxu0
    %v104 = vadd.f32 %v29, %v103
    %v105 = vpop.f32.mrb[0].mxu0
    %106 = vmatprep.mubr.f32.mxu0 0.0
    %107 = vmatmul.mubr.f32.gmra.mrb[0].mxu0 %v35
    %v108 = vpop.f32.mrb[0].mxu0
    %v109 = vadd.f32 %v29, %v108
    %v110 = vpop.f32.mrb[0].mxu0
    %111 = vdwg.mxu0
    %v112 = vmax.f32 %v104, 0.0
    %v113 = vmax.f32 %v109, 0.0
    %v114 = vld [vmem:[%s2] sm:$0xff]
    %v115 = vld [vmem:[%s2 + $0x8] sm:$0xff]
    %v116 = vld [vmem:[%s2 + $0x10] sm:$0xff]
    %v117 = vld [vmem:[%s2 + $0x18] sm:$0xff]
    %v118 = vld [vmem:[%s2 + $0x20] sm:$0xff]
    %v119 = vld [vmem:[%s2 + $0x28] sm:$0xff]
    %v120 = vld [vmem:[%s2 + $0x30] sm:$0xff]
    %v121 = vld [vmem:[%s2 + $0x38] sm:$0xff]
    %v122 = vld [vmem:[%s2 + $0x40] sm:$0xff]
    %v123 = vld [vmem:[%s2 + $0x48] sm:$0xff]
    %v124 = vld [vmem:[%s2 + $0x50] sm:$0xff]
    %v125 = vld [vmem:[%s2 + $0x58] sm:$0xff]
    %v126 = vld [vmem:[%s2 + $0x60] sm:$0xff]
    %v127 = vld [vmem:[%s2 + $0x68] sm:$0xff]
    %v128 = vld [vmem:[%s2 + $0x70] sm:$0xff]
    %v129 = vld [vmem:[%s2 + $0x78] sm:$0xff]
    %v130 = vld [vmem:[%s2 + $0xe0] sm:$0xff]
    %v131 = vld [vmem:[%s2 + $0xe8] sm:$0xff]
    %132 = vmatprep.subr.mxu0 0.0
    %133 = vmatpush1.msra.mxu0 %v114
    %134 = vmatprep.subr.mxu0 0.0
    %135 = vmatpush1.msra.mxu0 %v115
    %136 = vmatprep.subr.mxu0 0.0
    %137 = vmatpush1.msra.mxu0 %v116
    %138 = vmatprep.subr.mxu0 0.0
    %139 = vmatpush1.msra.mxu0 %v117
    %140 = vmatprep.subr.mxu0 0.0
    %141 = vmatpush1.msra.mxu0 %v118
    %142 = vmatprep.subr.mxu0 0.0
    %143 = vmatpush1.msra.mxu0 %v119
    %144 = vmatprep.subr.mxu0 0.0
    %145 = vmatpush1.msra.mxu0 %v120
    %146 = vmatprep.subr.mxu0 0.0
    %147 = vmatpush1.msra.mxu0 %v121
    %148 = vmatprep.subr.mxu0 0.0
    %149 = vmatpush1.msra.mxu0 %v122
    %150 = vmatprep.subr.mxu0 0.0
    %151 = vmatpush1.msra.mxu0 %v123
    %152 = vmatprep.subr.mxu0 0.0
    %153 = vmatpush1.msra.mxu0 %v124
    %154 = vmatprep.subr.mxu0 0.0
    %155 = vmatpush1.msra.mxu0 %v125
    %156 = vmatprep.subr.mxu0 0.0
    %157 = vmatpush1.msra.mxu0 %v126
    %158 = vmatprep.subr.mxu0 0.0
    %159 = vmatpush1.msra.mxu0 %v127
    %160 = vmatprep.subr.mxu0 0.0
    %161 = vmatpush1.msra.mxu0 %v128
    %162 = vmatprep.subr.mxu0 0.0
    %163 = vmatpush1.msra.mxu0 %v129
    %164 = vmatprep.subr.mxu0 0.0
    %165 = vmatpush1.msra.mxu0 0.0
    %166 = vmatprep.subr.mxu0 0.0
    %167 = vmatpush1.msra.mxu0 0.0
    %168 = vmatprep.subr.mxu0 0.0
    %169 = vmatpush1.msra.mxu0 0.0
    %170 = vmatprep.subr.mxu0 0.0
    %171 = vmatpush1.msra.mxu0 0.0
    %172 = vmatprep.subr.mxu0 0.0
    %173 = vmatpush1.msra.mxu0 0.0
    %174 = vmatprep.subr.mxu0 0.0
    %175 = vmatpush1.msra.mxu0 0.0
    %176 = vmatprep.subr.mxu0 0.0
    %177 = vmatpush1.msra.mxu0 0.0
    %178 = vmatprep.subr.mxu0 0.0
    %179 = vmatpush1.msra.mxu0 0.0
    %180 = vmatprep.subr.mxu0 0.0
    %181 = vmatpush1.msra.mxu0 0.0
    %182 = vmatprep.subr.mxu0 0.0
    %183 = vmatpush1.msra.mxu0 0.0
    %184 = vmatprep.subr.mxu0 0.0
    %185 = vmatpush1.msra.mxu0 0.0
    %186 = vmatprep.subr.mxu0 0.0
    %187 = vmatpush1.msra.mxu0 0.0
    %188 = vmatprep.subr.mxu0 0.0
    %189 = vmatpush1.msra.mxu0 0.0
    %190 = vmatprep.subr.mxu0 0.0
    %191 = vmatpush1.msra.mxu0 0.0
    %192 = vmatprep.subr.mxu0 0.0
    %193 = vmatpush1.msra.mxu0 0.0
    %194 = vmatprep.subr.mxu0 0.0
    %195 = vmatpush1.msra.mxu0 0.0
    %196 = vmatprep.mubr.f32.mxu0 0.0
    %197 = vmatmul.mubr.f32.gmra.mrb[0].mxu0 %v112
    %v198 = vpop.f32.mrb[0].mxu0
    %v199 = vadd.f32 %v130, %v198
    %v200 = vpop.f32.mrb[0].mxu0
    %201 = vmatprep.mubr.f32.mxu0 0.0
    %202 = vmatmul.mubr.f32.gmra.mrb[0].mxu0 %v113
    %v203 = vpop.f32.mrb[0].mxu0
    %v204 = vadd.f32 %v131, %v203
    %v205 = vpop.f32.mrb[0].mxu0
    %206 = vdwg.mxu0
    %v207 = vmax.f32 %v199, 0.0
    %v208 = vmax.f32 %v204, 0.0
    %v209 = vld [vmem:[%s3] sm:$0xff]
    %v210 = vld [vmem:[%s3 + $0x8] sm:$0xff]
    %v211 = vld [vmem:[%s4] sm:$0x1]
    %212 = vset.pattern.permute.xlu0 0
    %213 = vperm.xlu0 %212, %v209
    %v214 = vpop.permute.xlu0 %213
    %215 = vset.pattern.permute.xlu0 0
    %216 = vperm.xlu0 %215, %v210
    %v217 = vpop.permute.xlu0 %216
    %v218 = vlaneseq
    %v219 = vshrl.u32 %v218, 7
    %v220 = vsub.s32 0, %v219
    %v221 = vrot.slane %v211, %v220
    %vm222 = vcmp.eq.s32.totalorder %v214, %v221
    %vm223 = vcmp.eq.s32.totalorder %v217, %v221
    %v224 = vld [vmem:[%s2 + $0x80] sm:$0xff]
    %v225 = vld [vmem:[%s2 + $0x88] sm:$0xff]
    %v226 = vld [vmem:[%s2 + $0x90] sm:$0xff]
    %v227 = vld [vmem:[%s2 + $0x98] sm:$0xff]
    %v228 = vld [vmem:[%s2 + $0xa0] sm:$0xff]
    %v229 = vld [vmem:[%s2 + $0xa8] sm:$0xff]
    %v230 = vld [vmem:[%s2 + $0xb0] sm:$0xff]
    %v231 = vld [vmem:[%s2 + $0xb8] sm:$0xff]
    %vm232 = vcmask 261120
    %v234 = vsel %vm232, %v207, 0
    %v237 = vsel %vm232, %v208, 0
    %239 = vmatprep.subr.mxu0 0.0
    %240 = vmatpush1.msra.mxu0 %v224
    %241 = vmatprep.subr.mxu0 0.0
    %242 = vmatpush1.msra.mxu0 %v225
    %243 = vmatprep.subr.mxu0 0.0
    %244 = vmatpush1.msra.mxu0 %v226
    %245 = vmatprep.subr.mxu0 0.0
    %246 = vmatpush1.msra.mxu0 %v227
    %247 = vmatprep.subr.mxu0 0.0
    %248 = vmatpush1.msra.mxu0 0.0
    %249 = vmatprep.subr.mxu0 0.0
    %250 = vmatpush1.msra.mxu0 0.0
    %251 = vmatprep.subr.mxu0 0.0
    %252 = vmatpush1.msra.mxu0 0.0
    %253 = vmatprep.subr.mxu0 0.0
    %254 = vmatpush1.msra.mxu0 0.0
    %255 = vmatprep.subr.mxu0 0.0
    %256 = vmatpush1.msra.mxu0 0.0
    %257 = vmatprep.subr.mxu0 0.0
    %258 = vmatpush1.msra.mxu0 0.0
    %259 = vmatprep.subr.mxu0 0.0
    %260 = vmatpush1.msra.mxu0 0.0
    %261 = vmatprep.subr.mxu0 0.0
    %262 = vmatpush1.msra.mxu0 0.0
    %263 = vmatprep.subr.mxu0 0.0
    %264 = vmatpush1.msra.mxu0 0.0
    %265 = vmatprep.subr.mxu0 0.0
    %266 = vmatpush1.msra.mxu0 0.0
    %267 = vmatprep.subr.mxu0 0.0
    %268 = vmatpush1.msra.mxu0 0.0
    %269 = vmatprep.subr.mxu0 0.0
    %270 = vmatpush1.msra.mxu0 0.0
    %271 = vmatprep.subr.mxu0 0.0
    %272 = vmatpush1.msra.mxu0 0.0
    %273 = vmatprep.subr.mxu0 0.0
    %274 = vmatpush1.msra.mxu0 0.0
    %275 = vmatprep.subr.mxu0 0.0
    %276 = vmatpush1.msra.mxu0 0.0
    %277 = vmatprep.subr.mxu0 0.0
    %278 = vmatpush1.msra.mxu0 0.0
    %279 = vmatprep.subr.mxu0 0.0
    %280 = vmatpush1.msra.mxu0 0.0
    %281 = vmatprep.subr.mxu0 0.0
    %282 = vmatpush1.msra.mxu0 0.0
    %283 = vmatprep.subr.mxu0 0.0
    %284 = vmatpush1.msra.mxu0 0.0
    %285 = vmatprep.subr.mxu0 0.0
    %286 = vmatpush1.msra.mxu0 0.0
    %287 = vmatprep.subr.mxu0 0.0
    %288 = vmatpush1.msra.mxu0 0.0
    %289 = vmatprep.subr.mxu0 0.0
    %290 = vmatpush1.msra.mxu0 0.0
    %291 = vmatprep.subr.mxu0 0.0
    %292 = vmatpush1.msra.mxu0 0.0
    %293 = vmatprep.subr.mxu0 0.0
    %294 = vmatpush1.msra.mxu0 0.0
    %295 = vmatprep.subr.mxu0 0.0
    %296 = vmatpush1.msra.mxu0 0.0
    %297 = vmatprep.subr.mxu0 0.0
    %298 = vmatpush1.msra.mxu0 0.0
    %299 = vmatprep.subr.mxu0 0.0
    %300 = vmatpush1.msra.mxu0 0.0
    %301 = vmatprep.subr.mxu0 0.0
    %302 = vmatpush1.msra.mxu0 0.0
    %303 = vmatprep.mubr.f32.mxu0 0.0
    %304 = vmatmul.mubr.f32.gmra.mrb[0].mxu0 %v234
    %v305 = vpop.f32.mrb[0].mxu0
    %v306 = vadd.f32 0.0, %v305
    %v307 = vpop.f32.mrb[0].mxu0
    %308 = vmatprep.mubr.f32.mxu0 0.0
    %309 = vmatmul.mubr.f32.gmra.mrb[0].mxu0 %v237
    %v310 = vpop.f32.mrb[0].mxu0
    %v311 = vadd.f32 0.0, %v310
    %v312 = vpop.f32.mrb[0].mxu0
    %313 = vdwg.mxu0
    %v315 = vsel %vm232, %v306, 0
    %v318 = vsel %vm232, %v311, 0
    %320 = vmatprep.subr.mxu0 0.0
    %321 = vmatpush1.xpose.msra.mxu0 %v234
    %322 = vmatprep.subr.mxu0 0.0
    %323 = vmatpush1.xpose.msra.mxu0 %v237
    %324 = vmatprep.subr.mxu0 0.0
    %325 = vmatpush1.xpose.msra.mxu0 0.0
    %326 = vmatprep.subr.mxu0 0.0
    %327 = vmatpush1.xpose.msra.mxu0 0.0
    %328 = vmatprep.subr.mxu0 0.0
    %329 = vmatpush1.xpose.msra.mxu0 0.0
    %330 = vmatprep.subr.mxu0 0.0
    %331 = vmatpush1.xpose.msra.mxu0 0.0
    %332 = vmatprep.subr.mxu0 0.0
    %333 = vmatpush1.xpose.msra.mxu0 0.0
    %334 = vmatprep.subr.mxu0 0.0
    %335 = vmatpush1.xpose.msra.mxu0 0.0
    %336 = vmatprep.subr.mxu0 0.0
    %337 = vmatpush1.xpose.msra.mxu0 0.0
    %338 = vmatprep.subr.mxu0 0.0
    %339 = vmatpush1.xpose.msra.mxu0 0.0
    %340 = vmatprep.subr.mxu0 0.0
    %341 = vmatpush1.xpose.msra.mxu0 0.0
    %342 = vmatprep.subr.mxu0 0.0
    %343 = vmatpush1.xpose.msra.mxu0 0.0
    %344 = vmatprep.subr.mxu0 0.0
    %345 = vmatpush1.xpose.msra.mxu0 0.0
    %346 = vmatprep.subr.mxu0 0.0
    %347 = vmatpush1.xpose.msra.mxu0 0.0
    %348 = vmatprep.subr.mxu0 0.0
    %349 = vmatpush1.xpose.msra.mxu0 0.0
    %350 = vmatprep.subr.mxu0 0.0
    %351 = vmatpush1.xpose.msra.mxu0 0.0
    %352 = vmatprep.subr.mxu0 0.0
    %353 = vmatpush1.xpose.msra.mxu0 0.0
    %354 = vmatprep.subr.mxu0 0.0
    %355 = vmatpush1.xpose.msra.mxu0 0.0
    %356 = vmatprep.subr.mxu0 0.0
    %357 = vmatpush1.xpose.msra.mxu0 0.0
    %358 = vmatprep.subr.mxu0 0.0
    %359 = vmatpush1.xpose.msra.mxu0 0.0
    %360 = vmatprep.subr.mxu0 0.0
    %361 = vmatpush1.xpose.msra.mxu0 0.0
    %362 = vmatprep.subr.mxu0 0.0
    %363 = vmatpush1.xpose.msra.mxu0 0.0
    %364 = vmatprep.subr.mxu0 0.0
    %365 = vmatpush1.xpose.msra.mxu0 0.0
    %366 = vmatprep.subr.mxu0 0.0
    %367 = vmatpush1.xpose.msra.mxu0 0.0
    %368 = vmatprep.subr.mxu0 0.0
    %369 = vmatpush1.xpose.msra.mxu0 0.0
    %370 = vmatprep.subr.mxu0 0.0
    %371 = vmatpush1.xpose.msra.mxu0 0.0
    %372 = vmatprep.subr.mxu0 0.0
    %373 = vmatpush1.xpose.msra.mxu0 0.0
    %374 = vmatprep.subr.mxu0 0.0
    %375 = vmatpush1.xpose.msra.mxu0 0.0
    %376 = vmatprep.subr.mxu0 0.0
    %377 = vmatpush1.xpose.msra.mxu0 0.0
    %378 = vmatprep.subr.mxu0 0.0
    %379 = vmatpush1.xpose.msra.mxu0 0.0
    %380 = vmatprep.subr.mxu0 0.0
    %381 = vmatpush1.xpose.msra.mxu0 0.0
    %382 = vmatprep.subr.mxu0 0.0
    %383 = vmatpush1.xpose.msra.mxu0 0.0
    %384 = vmatprep.mubr.f32.mxu0 0.0
    %385 = vmatmul.mubr.f32.gmra.mrb[0].mxu0 %v315
    %v386 = vpop.f32.mrb[0].mxu0
    %v387 = vadd.f32 0.0, %v386
    %v388 = vpop.f32.mrb[0].mxu0
    %389 = vmatprep.mubr.f32.mxu0 0.0
    %390 = vmatmul.mubr.f32.gmra.mrb[0].mxu0 %v318
    %v391 = vpop.f32.mrb[0].mxu0
    %v392 = vadd.f32 0.0, %v391
    %v393 = vpop.f32.mrb[0].mxu0
    %394 = vdwg.mxu0
    %v395 = vsel %vm222, %v387, -1e+30
    %v396 = vsel %vm223, %v392, -1e+30
    %v397 = vsel %vm30, %v395, -inf
    %398 = vmax.xlane.f32.xlu0 %v397
    %v399 = vpop.xlane.xlu0 %398
    %v400 = vsel %vm30, %v396, -inf
    %401 = vmax.xlane.f32.xlu0 %v400
    %v402 = vpop.xlane.xlu0 %401
    %v403 = vsub.f32 %v395, %v399
    %v404 = vsub.f32 %v396, %v402
    %v405 = vmul.f32 %v403, 1.442695
    %v406 = vpow.pop %v405
    %v407 = vmul.f32 %v404, 1.442695
    %v408 = vpow.pop %v407
    %v409 = vsel %vm30, %v406, 0.0
    %410 = vadd.xlane.f32.xlu0 %v409
    %v411 = vpop.xlane.xlu0 %410
    %v412 = vsel %vm30, %v408, 0.0
    %413 = vadd.xlane.f32.xlu0 %v412
    %v414 = vpop.xlane.xlu0 %413
    %v416 = vsel %vm30, %v406, 0
    %v419 = vsel %vm30, %v408, 0
    %421 = vmatprep.subr.mxu0 0.0
    %422 = vmatpush1.msra.mxu0 %v207
    %423 = vmatprep.subr.mxu0 0.0
    %424 = vmatpush1.msra.mxu0 %v208
    %425 = vmatprep.subr.mxu0 0.0
    %426 = vmatpush1.msra.mxu0 0.0
    %427 = vmatprep.subr.mxu0 0.0
    %428 = vmatpush1.msra.mxu0 0.0
    %429 = vmatprep.subr.mxu0 0.0
    %430 = vmatpush1.msra.mxu0 0.0
    %431 = vmatprep.subr.mxu0 0.0
    %432 = vmatpush1.msra.mxu0 0.0
    %433 = vmatprep.subr.mxu0 0.0
    %434 = vmatpush1.msra.mxu0 0.0
    %435 = vmatprep.subr.mxu0 0.0
    %436 = vmatpush1.msra.mxu0 0.0
    %437 = vmatprep.subr.mxu0 0.0
    %438 = vmatpush1.msra.mxu0 0.0
    %439 = vmatprep.subr.mxu0 0.0
    %440 = vmatpush1.msra.mxu0 0.0
    %441 = vmatprep.subr.mxu0 0.0
    %442 = vmatpush1.msra.mxu0 0.0
    %443 = vmatprep.subr.mxu0 0.0
    %444 = vmatpush1.msra.mxu0 0.0
    %445 = vmatprep.subr.mxu0 0.0
    %446 = vmatpush1.msra.mxu0 0.0
    %447 = vmatprep.subr.mxu0 0.0
    %448 = vmatpush1.msra.mxu0 0.0
    %449 = vmatprep.subr.mxu0 0.0
    %450 = vmatpush1.msra.mxu0 0.0
    %451 = vmatprep.subr.mxu0 0.0
    %452 = vmatpush1.msra.mxu0 0.0
    %453 = vmatprep.subr.mxu0 0.0
    %454 = vmatpush1.msra.mxu0 0.0
    %455 = vmatprep.subr.mxu0 0.0
    %456 = vmatpush1.msra.mxu0 0.0
    %457 = vmatprep.subr.mxu0 0.0
    %458 = vmatpush1.msra.mxu0 0.0
    %459 = vmatprep.subr.mxu0 0.0
    %460 = vmatpush1.msra.mxu0 0.0
    %461 = vmatprep.subr.mxu0 0.0
    %462 = vmatpush1.msra.mxu0 0.0
    %463 = vmatprep.subr.mxu0 0.0
    %464 = vmatpush1.msra.mxu0 0.0
    %465 = vmatprep.subr.mxu0 0.0
    %466 = vmatpush1.msra.mxu0 0.0
    %467 = vmatprep.subr.mxu0 0.0
    %468 = vmatpush1.msra.mxu0 0.0
    %469 = vmatprep.subr.mxu0 0.0
    %470 = vmatpush1.msra.mxu0 0.0
    %471 = vmatprep.subr.mxu0 0.0
    %472 = vmatpush1.msra.mxu0 0.0
    %473 = vmatprep.subr.mxu0 0.0
    %474 = vmatpush1.msra.mxu0 0.0
    %475 = vmatprep.subr.mxu0 0.0
    %476 = vmatpush1.msra.mxu0 0.0
    %477 = vmatprep.subr.mxu0 0.0
    %478 = vmatpush1.msra.mxu0 0.0
    %479 = vmatprep.subr.mxu0 0.0
    %480 = vmatpush1.msra.mxu0 0.0
    %481 = vmatprep.subr.mxu0 0.0
    %482 = vmatpush1.msra.mxu0 0.0
    %483 = vmatprep.subr.mxu0 0.0
    %484 = vmatpush1.msra.mxu0 0.0
    %485 = vmatprep.mubr.f32.mxu0 0.0
    %486 = vmatmul.mubr.f32.gmra.mrb[0].mxu0 %v416
    %v487 = vpop.f32.mrb[0].mxu0
    %v488 = vadd.f32 0.0, %v487
    %v489 = vpop.f32.mrb[0].mxu0
    %490 = vmatprep.mubr.f32.mxu0 0.0
    %491 = vmatmul.mubr.f32.gmra.mrb[0].mxu0 %v419
    %v492 = vpop.f32.mrb[0].mxu0
    %v493 = vadd.f32 0.0, %v492
    %v494 = vpop.f32.mrb[0].mxu0
    %495 = vdwg.mxu0
    %v496 = vrcp.pop %v411
    %v497 = vmul.f32 1.0, %v496
    %v498 = vrcp.pop %v414
    %v499 = vmul.f32 1.0, %v498
    %v500 = vmul.f32 %v488, %v497
    %v501 = vmul.f32 %v493, %v499
    %v503 = vsel %vm232, %v500, 0
    %v506 = vsel %vm232, %v501, 0
    %508 = vmatprep.subr.mxu0 0.0
    %509 = vmatpush1.msra.mxu0 %v228
    %510 = vmatprep.subr.mxu0 0.0
    %511 = vmatpush1.msra.mxu0 %v229
    %512 = vmatprep.subr.mxu0 0.0
    %513 = vmatpush1.msra.mxu0 %v230
    %514 = vmatprep.subr.mxu0 0.0
    %515 = vmatpush1.msra.mxu0 %v231
    %516 = vmatprep.subr.mxu0 0.0
    %517 = vmatpush1.msra.mxu0 0.0
    %518 = vmatprep.subr.mxu0 0.0
    %519 = vmatpush1.msra.mxu0 0.0
    %520 = vmatprep.subr.mxu0 0.0
    %521 = vmatpush1.msra.mxu0 0.0
    %522 = vmatprep.subr.mxu0 0.0
    %523 = vmatpush1.msra.mxu0 0.0
    %524 = vmatprep.subr.mxu0 0.0
    %525 = vmatpush1.msra.mxu0 0.0
    %526 = vmatprep.subr.mxu0 0.0
    %527 = vmatpush1.msra.mxu0 0.0
    %528 = vmatprep.subr.mxu0 0.0
    %529 = vmatpush1.msra.mxu0 0.0
    %530 = vmatprep.subr.mxu0 0.0
    %531 = vmatpush1.msra.mxu0 0.0
    %532 = vmatprep.subr.mxu0 0.0
    %533 = vmatpush1.msra.mxu0 0.0
    %534 = vmatprep.subr.mxu0 0.0
    %535 = vmatpush1.msra.mxu0 0.0
    %536 = vmatprep.subr.mxu0 0.0
    %537 = vmatpush1.msra.mxu0 0.0
    %538 = vmatprep.subr.mxu0 0.0
    %539 = vmatpush1.msra.mxu0 0.0
    %540 = vmatprep.subr.mxu0 0.0
    %541 = vmatpush1.msra.mxu0 0.0
    %542 = vmatprep.subr.mxu0 0.0
    %543 = vmatpush1.msra.mxu0 0.0
    %544 = vmatprep.subr.mxu0 0.0
    %545 = vmatpush1.msra.mxu0 0.0
    %546 = vmatprep.subr.mxu0 0.0
    %547 = vmatpush1.msra.mxu0 0.0
    %548 = vmatprep.subr.mxu0 0.0
    %549 = vmatpush1.msra.mxu0 0.0
    %550 = vmatprep.subr.mxu0 0.0
    %551 = vmatpush1.msra.mxu0 0.0
    %552 = vmatprep.subr.mxu0 0.0
    %553 = vmatpush1.msra.mxu0 0.0
    %554 = vmatprep.subr.mxu0 0.0
    %555 = vmatpush1.msra.mxu0 0.0
    %556 = vmatprep.subr.mxu0 0.0
    %557 = vmatpush1.msra.mxu0 0.0
    %558 = vmatprep.subr.mxu0 0.0
    %559 = vmatpush1.msra.mxu0 0.0
    %560 = vmatprep.subr.mxu0 0.0
    %561 = vmatpush1.msra.mxu0 0.0
    %562 = vmatprep.subr.mxu0 0.0
    %563 = vmatpush1.msra.mxu0 0.0
    %564 = vmatprep.subr.mxu0 0.0
    %565 = vmatpush1.msra.mxu0 0.0
    %566 = vmatprep.subr.mxu0 0.0
    %567 = vmatpush1.msra.mxu0 0.0
    %568 = vmatprep.subr.mxu0 0.0
    %569 = vmatpush1.msra.mxu0 0.0
    %570 = vmatprep.subr.mxu0 0.0
    %571 = vmatpush1.msra.mxu0 0.0
    %572 = vmatprep.mubr.f32.mxu0 0.0
    %573 = vmatmul.mubr.f32.gmra.mrb[0].mxu0 %v503
    %v574 = vpop.f32.mrb[0].mxu0
    %v575 = vadd.f32 0.0, %v574
    %v576 = vpop.f32.mrb[0].mxu0
    %577 = vmatprep.mubr.f32.mxu0 0.0
    %578 = vmatmul.mubr.f32.gmra.mrb[0].mxu0 %v506
    %v579 = vpop.f32.mrb[0].mxu0
    %v580 = vadd.f32 0.0, %v579
    %v581 = vpop.f32.mrb[0].mxu0
    %582 = vdwg.mxu0
    %v583 = vmax.f32 %v575, 0.0
    %v584 = vmax.f32 %v580, 0.0
    %v585 = vld [vmem:[%s2 + $0xc0] sm:$0xff]
    %v586 = vld [vmem:[%s2 + $0xc8] sm:$0xff]
    %v587 = vld [vmem:[%s2 + $0xd0] sm:$0xff]
    %v588 = vld [vmem:[%s2 + $0xd8] sm:$0xff]
    %v590 = vsel %vm232, %v583, 0
    %v593 = vsel %vm232, %v584, 0
    %595 = vmatprep.subr.mxu0 0.0
    %596 = vmatpush1.msra.mxu0 %v224
    %597 = vmatprep.subr.mxu0 0.0
    %598 = vmatpush1.msra.mxu0 %v225
    %599 = vmatprep.subr.mxu0 0.0
    %600 = vmatpush1.msra.mxu0 %v226
    %601 = vmatprep.subr.mxu0 0.0
    %602 = vmatpush1.msra.mxu0 %v227
    %603 = vmatprep.subr.mxu0 0.0
    %604 = vmatpush1.msra.mxu0 0.0
    %605 = vmatprep.subr.mxu0 0.0
    %606 = vmatpush1.msra.mxu0 0.0
    %607 = vmatprep.subr.mxu0 0.0
    %608 = vmatpush1.msra.mxu0 0.0
    %609 = vmatprep.subr.mxu0 0.0
    %610 = vmatpush1.msra.mxu0 0.0
    %611 = vmatprep.subr.mxu0 0.0
    %612 = vmatpush1.msra.mxu0 0.0
    %613 = vmatprep.subr.mxu0 0.0
    %614 = vmatpush1.msra.mxu0 0.0
    %615 = vmatprep.subr.mxu0 0.0
    %616 = vmatpush1.msra.mxu0 0.0
    %617 = vmatprep.subr.mxu0 0.0
    %618 = vmatpush1.msra.mxu0 0.0
    %619 = vmatprep.subr.mxu0 0.0
    %620 = vmatpush1.msra.mxu0 0.0
    %621 = vmatprep.subr.mxu0 0.0
    %622 = vmatpush1.msra.mxu0 0.0
    %623 = vmatprep.subr.mxu0 0.0
    %624 = vmatpush1.msra.mxu0 0.0
    %625 = vmatprep.subr.mxu0 0.0
    %626 = vmatpush1.msra.mxu0 0.0
    %627 = vmatprep.subr.mxu0 0.0
    %628 = vmatpush1.msra.mxu0 0.0
    %629 = vmatprep.subr.mxu0 0.0
    %630 = vmatpush1.msra.mxu0 0.0
    %631 = vmatprep.subr.mxu0 0.0
    %632 = vmatpush1.msra.mxu0 0.0
    %633 = vmatprep.subr.mxu0 0.0
    %634 = vmatpush1.msra.mxu0 0.0
    %635 = vmatprep.subr.mxu0 0.0
    %636 = vmatpush1.msra.mxu0 0.0
    %637 = vmatprep.subr.mxu0 0.0
    %638 = vmatpush1.msra.mxu0 0.0
    %639 = vmatprep.subr.mxu0 0.0
    %640 = vmatpush1.msra.mxu0 0.0
    %641 = vmatprep.subr.mxu0 0.0
    %642 = vmatpush1.msra.mxu0 0.0
    %643 = vmatprep.subr.mxu0 0.0
    %644 = vmatpush1.msra.mxu0 0.0
    %645 = vmatprep.subr.mxu0 0.0
    %646 = vmatpush1.msra.mxu0 0.0
    %647 = vmatprep.subr.mxu0 0.0
    %648 = vmatpush1.msra.mxu0 0.0
    %649 = vmatprep.subr.mxu0 0.0
    %650 = vmatpush1.msra.mxu0 0.0
    %651 = vmatprep.subr.mxu0 0.0
    %652 = vmatpush1.msra.mxu0 0.0
    %653 = vmatprep.subr.mxu0 0.0
    %654 = vmatpush1.msra.mxu0 0.0
    %655 = vmatprep.subr.mxu0 0.0
    %656 = vmatpush1.msra.mxu0 0.0
    %657 = vmatprep.subr.mxu0 0.0
    %658 = vmatpush1.msra.mxu0 0.0
    %659 = vmatprep.mubr.f32.mxu0 0.0
    %660 = vmatmul.mubr.f32.gmra.mrb[0].mxu0 %v590
    %v661 = vpop.f32.mrb[0].mxu0
    %v662 = vadd.f32 0.0, %v661
    %v663 = vpop.f32.mrb[0].mxu0
    %664 = vmatprep.mubr.f32.mxu0 0.0
    %665 = vmatmul.mubr.f32.gmra.mrb[0].mxu0 %v593
    %v666 = vpop.f32.mrb[0].mxu0
    %v667 = vadd.f32 0.0, %v666
    %v668 = vpop.f32.mrb[0].mxu0
    %669 = vdwg.mxu0
    %v671 = vsel %vm232, %v662, 0
    %v674 = vsel %vm232, %v667, 0
    %676 = vmatprep.subr.mxu0 0.0
    %677 = vmatpush1.xpose.msra.mxu0 %v590
    %678 = vmatprep.subr.mxu0 0.0
    %679 = vmatpush1.xpose.msra.mxu0 %v593
    %680 = vmatprep.subr.mxu0 0.0
    %681 = vmatpush1.xpose.msra.mxu0 0.0
    %682 = vmatprep.subr.mxu0 0.0
    %683 = vmatpush1.xpose.msra.mxu0 0.0
    %684 = vmatprep.subr.mxu0 0.0
    %685 = vmatpush1.xpose.msra.mxu0 0.0
    %686 = vmatprep.subr.mxu0 0.0
    %687 = vmatpush1.xpose.msra.mxu0 0.0
    %688 = vmatprep.subr.mxu0 0.0
    %689 = vmatpush1.xpose.msra.mxu0 0.0
    %690 = vmatprep.subr.mxu0 0.0
    %691 = vmatpush1.xpose.msra.mxu0 0.0
    %692 = vmatprep.subr.mxu0 0.0
    %693 = vmatpush1.xpose.msra.mxu0 0.0
    %694 = vmatprep.subr.mxu0 0.0
    %695 = vmatpush1.xpose.msra.mxu0 0.0
    %696 = vmatprep.subr.mxu0 0.0
    %697 = vmatpush1.xpose.msra.mxu0 0.0
    %698 = vmatprep.subr.mxu0 0.0
    %699 = vmatpush1.xpose.msra.mxu0 0.0
    %700 = vmatprep.subr.mxu0 0.0
    %701 = vmatpush1.xpose.msra.mxu0 0.0
    %702 = vmatprep.subr.mxu0 0.0
    %703 = vmatpush1.xpose.msra.mxu0 0.0
    %704 = vmatprep.subr.mxu0 0.0
    %705 = vmatpush1.xpose.msra.mxu0 0.0
    %706 = vmatprep.subr.mxu0 0.0
    %707 = vmatpush1.xpose.msra.mxu0 0.0
    %708 = vmatprep.subr.mxu0 0.0
    %709 = vmatpush1.xpose.msra.mxu0 0.0
    %710 = vmatprep.subr.mxu0 0.0
    %711 = vmatpush1.xpose.msra.mxu0 0.0
    %712 = vmatprep.subr.mxu0 0.0
    %713 = vmatpush1.xpose.msra.mxu0 0.0
    %714 = vmatprep.subr.mxu0 0.0
    %715 = vmatpush1.xpose.msra.mxu0 0.0
    %716 = vmatprep.subr.mxu0 0.0
    %717 = vmatpush1.xpose.msra.mxu0 0.0
    %718 = vmatprep.subr.mxu0 0.0
    %719 = vmatpush1.xpose.msra.mxu0 0.0
    %720 = vmatprep.subr.mxu0 0.0
    %721 = vmatpush1.xpose.msra.mxu0 0.0
    %722 = vmatprep.subr.mxu0 0.0
    %723 = vmatpush1.xpose.msra.mxu0 0.0
    %724 = vmatprep.subr.mxu0 0.0
    %725 = vmatpush1.xpose.msra.mxu0 0.0
    %726 = vmatprep.subr.mxu0 0.0
    %727 = vmatpush1.xpose.msra.mxu0 0.0
    %728 = vmatprep.subr.mxu0 0.0
    %729 = vmatpush1.xpose.msra.mxu0 0.0
    %730 = vmatprep.subr.mxu0 0.0
    %731 = vmatpush1.xpose.msra.mxu0 0.0
    %732 = vmatprep.subr.mxu0 0.0
    %733 = vmatpush1.xpose.msra.mxu0 0.0
    %734 = vmatprep.subr.mxu0 0.0
    %735 = vmatpush1.xpose.msra.mxu0 0.0
    %736 = vmatprep.subr.mxu0 0.0
    %737 = vmatpush1.xpose.msra.mxu0 0.0
    %738 = vmatprep.subr.mxu0 0.0
    %739 = vmatpush1.xpose.msra.mxu0 0.0
    %740 = vmatprep.mubr.f32.mxu0 0.0
    %741 = vmatmul.mubr.f32.gmra.mrb[0].mxu0 %v671
    %v742 = vpop.f32.mrb[0].mxu0
    %v743 = vadd.f32 0.0, %v742
    %v744 = vpop.f32.mrb[0].mxu0
    %745 = vmatprep.mubr.f32.mxu0 0.0
    %746 = vmatmul.mubr.f32.gmra.mrb[0].mxu0 %v674
    %v747 = vpop.f32.mrb[0].mxu0
    %v748 = vadd.f32 0.0, %v747
    %v749 = vpop.f32.mrb[0].mxu0
    %750 = vdwg.mxu0
    %v751 = vsel %vm222, %v743, -1e+30
    %v752 = vsel %vm223, %v748, -1e+30
    %v753 = vsel %vm30, %v751, -inf
    %754 = vmax.xlane.f32.xlu0 %v753
    %v755 = vpop.xlane.xlu0 %754
    %v756 = vsel %vm30, %v752, -inf
    %757 = vmax.xlane.f32.xlu0 %v756
    %v758 = vpop.xlane.xlu0 %757
    %v759 = vsub.f32 %v751, %v755
    %v760 = vsub.f32 %v752, %v758
    %v761 = vmul.f32 %v759, 1.442695
    %v762 = vpow.pop %v761
    %v763 = vmul.f32 %v760, 1.442695
    %v764 = vpow.pop %v763
    %v765 = vsel %vm30, %v762, 0.0
    %766 = vadd.xlane.f32.xlu0 %v765
    %v767 = vpop.xlane.xlu0 %766
    %v768 = vsel %vm30, %v764, 0.0
    %769 = vadd.xlane.f32.xlu0 %v768
    %v770 = vpop.xlane.xlu0 %769
    %v772 = vsel %vm30, %v762, 0
    %v775 = vsel %vm30, %v764, 0
    %777 = vmatprep.subr.mxu0 0.0
    %778 = vmatpush1.msra.mxu0 %v583
    %779 = vmatprep.subr.mxu0 0.0
    %780 = vmatpush1.msra.mxu0 %v584
    %781 = vmatprep.subr.mxu0 0.0
    %782 = vmatpush1.msra.mxu0 0.0
    %783 = vmatprep.subr.mxu0 0.0
    %784 = vmatpush1.msra.mxu0 0.0
    %785 = vmatprep.subr.mxu0 0.0
    %786 = vmatpush1.msra.mxu0 0.0
    %787 = vmatprep.subr.mxu0 0.0
    %788 = vmatpush1.msra.mxu0 0.0
    %789 = vmatprep.subr.mxu0 0.0
    %790 = vmatpush1.msra.mxu0 0.0
    %791 = vmatprep.subr.mxu0 0.0
    %792 = vmatpush1.msra.mxu0 0.0
    %793 = vmatprep.subr.mxu0 0.0
    %794 = vmatpush1.msra.mxu0 0.0
    %795 = vmatprep.subr.mxu0 0.0
    %796 = vmatpush1.msra.mxu0 0.0
    %797 = vmatprep.subr.mxu0 0.0
    %798 = vmatpush1.msra.mxu0 0.0
    %799 = vmatprep.subr.mxu0 0.0
    %800 = vmatpush1.msra.mxu0 0.0
    %801 = vmatprep.subr.mxu0 0.0
    %802 = vmatpush1.msra.mxu0 0.0
    %803 = vmatprep.subr.mxu0 0.0
    %804 = vmatpush1.msra.mxu0 0.0
    %805 = vmatprep.subr.mxu0 0.0
    %806 = vmatpush1.msra.mxu0 0.0
    %807 = vmatprep.subr.mxu0 0.0
    %808 = vmatpush1.msra.mxu0 0.0
    %809 = vmatprep.subr.mxu0 0.0
    %810 = vmatpush1.msra.mxu0 0.0
    %811 = vmatprep.subr.mxu0 0.0
    %812 = vmatpush1.msra.mxu0 0.0
    %813 = vmatprep.subr.mxu0 0.0
    %814 = vmatpush1.msra.mxu0 0.0
    %815 = vmatprep.subr.mxu0 0.0
    %816 = vmatpush1.msra.mxu0 0.0
    %817 = vmatprep.subr.mxu0 0.0
    %818 = vmatpush1.msra.mxu0 0.0
    %819 = vmatprep.subr.mxu0 0.0
    %820 = vmatpush1.msra.mxu0 0.0
    %821 = vmatprep.subr.mxu0 0.0
    %822 = vmatpush1.msra.mxu0 0.0
    %823 = vmatprep.subr.mxu0 0.0
    %824 = vmatpush1.msra.mxu0 0.0
    %825 = vmatprep.subr.mxu0 0.0
    %826 = vmatpush1.msra.mxu0 0.0
    %827 = vmatprep.subr.mxu0 0.0
    %828 = vmatpush1.msra.mxu0 0.0
    %829 = vmatprep.subr.mxu0 0.0
    %830 = vmatpush1.msra.mxu0 0.0
    %831 = vmatprep.subr.mxu0 0.0
    %832 = vmatpush1.msra.mxu0 0.0
    %833 = vmatprep.subr.mxu0 0.0
    %834 = vmatpush1.msra.mxu0 0.0
    %835 = vmatprep.subr.mxu0 0.0
    %836 = vmatpush1.msra.mxu0 0.0
    %837 = vmatprep.subr.mxu0 0.0
    %838 = vmatpush1.msra.mxu0 0.0
    %839 = vmatprep.subr.mxu0 0.0
    %840 = vmatpush1.msra.mxu0 0.0
    %841 = vmatprep.mubr.f32.mxu0 0.0
    %842 = vmatmul.mubr.f32.gmra.mrb[0].mxu0 %v772
    %v843 = vpop.f32.mrb[0].mxu0
    %v844 = vadd.f32 0.0, %v843
    %v845 = vpop.f32.mrb[0].mxu0
    %846 = vmatprep.mubr.f32.mxu0 0.0
    %847 = vmatmul.mubr.f32.gmra.mrb[0].mxu0 %v775
    %v848 = vpop.f32.mrb[0].mxu0
    %v849 = vadd.f32 0.0, %v848
    %v850 = vpop.f32.mrb[0].mxu0
    %851 = vdwg.mxu0
    %v852 = vrcp.pop %v767
    %v853 = vmul.f32 1.0, %v852
    %v854 = vrcp.pop %v770
    %v855 = vmul.f32 1.0, %v854
    %v856 = vmul.f32 %v844, %v853
    %v857 = vmul.f32 %v849, %v855
    %v859 = vsel %vm232, %v856, 0
    %v862 = vsel %vm232, %v857, 0
    %864 = vmatprep.subr.mxu0 0.0
    %865 = vmatpush1.msra.mxu0 %v585
    %866 = vmatprep.subr.mxu0 0.0
    %867 = vmatpush1.msra.mxu0 %v586
    %868 = vmatprep.subr.mxu0 0.0
    %869 = vmatpush1.msra.mxu0 %v587
    %870 = vmatprep.subr.mxu0 0.0
    %871 = vmatpush1.msra.mxu0 %v588
    %872 = vmatprep.subr.mxu0 0.0
    %873 = vmatpush1.msra.mxu0 0.0
    %874 = vmatprep.subr.mxu0 0.0
    %875 = vmatpush1.msra.mxu0 0.0
    %876 = vmatprep.subr.mxu0 0.0
    %877 = vmatpush1.msra.mxu0 0.0
    %878 = vmatprep.subr.mxu0 0.0
    %879 = vmatpush1.msra.mxu0 0.0
    %880 = vmatprep.subr.mxu0 0.0
    %881 = vmatpush1.msra.mxu0 0.0
    %882 = vmatprep.subr.mxu0 0.0
    %883 = vmatpush1.msra.mxu0 0.0
    %884 = vmatprep.subr.mxu0 0.0
    %885 = vmatpush1.msra.mxu0 0.0
    %886 = vmatprep.subr.mxu0 0.0
    %887 = vmatpush1.msra.mxu0 0.0
    %888 = vmatprep.subr.mxu0 0.0
    %889 = vmatpush1.msra.mxu0 0.0
    %890 = vmatprep.subr.mxu0 0.0
    %891 = vmatpush1.msra.mxu0 0.0
    %892 = vmatprep.subr.mxu0 0.0
    %893 = vmatpush1.msra.mxu0 0.0
    %894 = vmatprep.subr.mxu0 0.0
    %895 = vmatpush1.msra.mxu0 0.0
    %896 = vmatprep.subr.mxu0 0.0
    %897 = vmatpush1.msra.mxu0 0.0
    %898 = vmatprep.subr.mxu0 0.0
    %899 = vmatpush1.msra.mxu0 0.0
    %900 = vmatprep.subr.mxu0 0.0
    %901 = vmatpush1.msra.mxu0 0.0
    %902 = vmatprep.subr.mxu0 0.0
    %903 = vmatpush1.msra.mxu0 0.0
    %904 = vmatprep.subr.mxu0 0.0
    %905 = vmatpush1.msra.mxu0 0.0
    %906 = vmatprep.subr.mxu0 0.0
    %907 = vmatpush1.msra.mxu0 0.0
    %908 = vmatprep.subr.mxu0 0.0
    %909 = vmatpush1.msra.mxu0 0.0
    %910 = vmatprep.subr.mxu0 0.0
    %911 = vmatpush1.msra.mxu0 0.0
    %912 = vmatprep.subr.mxu0 0.0
    %913 = vmatpush1.msra.mxu0 0.0
    %914 = vmatprep.subr.mxu0 0.0
    %915 = vmatpush1.msra.mxu0 0.0
    %916 = vmatprep.subr.mxu0 0.0
    %917 = vmatpush1.msra.mxu0 0.0
    %918 = vmatprep.subr.mxu0 0.0
    %919 = vmatpush1.msra.mxu0 0.0
    %920 = vmatprep.subr.mxu0 0.0
    %921 = vmatpush1.msra.mxu0 0.0
    %922 = vmatprep.subr.mxu0 0.0
    %923 = vmatpush1.msra.mxu0 0.0
    %924 = vmatprep.subr.mxu0 0.0
    %925 = vmatpush1.msra.mxu0 0.0
    %926 = vmatprep.subr.mxu0 0.0
    %927 = vmatpush1.msra.mxu0 0.0
    %928 = vmatprep.mubr.f32.mxu0 0.0
    %929 = vmatmul.mubr.f32.gmra.mrb[0].mxu0 %v859
    %v930 = vpop.f32.mrb[0].mxu0
    %v931 = vadd.f32 0.0, %v930
    %v932 = vpop.f32.mrb[0].mxu0
    %933 = vmatprep.mubr.f32.mxu0 0.0
    %934 = vmatmul.mubr.f32.gmra.mrb[0].mxu0 %v862
    %v935 = vpop.f32.mrb[0].mxu0
    %v936 = vadd.f32 0.0, %v935
    %v937 = vpop.f32.mrb[0].mxu0
    %938 = vdwg.mxu0
    %v939 = vmax.f32 %v931, 0.0
    %v940 = vmax.f32 %v936, 0.0
    %941 = vst.msk [vmem:[#allocation2] sm:$0xff] %vm232, %v939
    %942 = vst.msk [vmem:[#allocation2 + $0x8] sm:$0xff] %vm232, %v940
    // Predicated region
    $region22: #{tpu_custom_call.1} parent=1 // pred_check
      _
    $region23: #{tpu_custom_call.1} parent=1 // pred_check_branch
      %944 = sbr.rel (0) target = $region25
    $region24: #{tpu_custom_call.1} parent=1 // pred_region
      %s946 = ssub.s32 256, 256
      %947 = vsyncadd [#allocation3], %s946
      %s948 = sshll.u32 [#allocation2], 4
      %s949 = int_to_ptr.vmem [resolvable:$true] %s948
      %954 = dma.vmem_to_hbm [thread:$0]  %s949, 256, %s5, [#allocation3], 128, 128, 8
    $region25: #{tpu_custom_call.1} parent=1 // pred_fallthru
      _
    // Predicated region
    $region26: #{tpu_custom_call.1} parent=1 // pred_check
      _
    $region27: #{tpu_custom_call.1} parent=1 // pred_check_branch
      %956 = sbr.rel (0) target = $region29
    $region28: #{tpu_custom_call.1} parent=1 // pred_region
      %957 = dma.done [#allocation3], 256
    $region29: #{tpu_custom_call.1} parent=1 // pred_fallthru
      _
    %958 = vsyncpa [#allocation3], 1

</llo_original>
